<compile_context>
chip_gen: v5e
topology: v5e:2x2
jax: 0.10.0
libtpu: 0.0.40
codegen_flags: <defaults>
</compile_context>

<pallas_src>
import jax
import jax.numpy as jnp
from jax.experimental import pallas as pl
from jax.experimental.pallas import tpu as pltpu


def agl_kernel(x_ref, wfc_ref, bnb_ref, wfcs_ref, bfcs_ref, o_ref, gap_ref, exp_ref):
    """Fused AGL forward for one batch block.

    x_ref   : (Bt, K, C, HW)  stacked branch feature maps (bf16 or f32)
    wfc_ref : (K*C, L)  fc conv weight (kernel (K,1)), flattened over (k, c),
                        eval-mode BatchNorm scale folded in
    bnb_ref : (1, L)    folded BatchNorm bias
    wfcs_ref: (L, K*C)  all K fcs 1x1-conv weights, flattened over (i, c)
    bfcs_ref: (1, K*C)  fcs biases, flattened over (i, c)
    o_ref   : (Bt, C, HW)
    gap_ref : VMEM scratch (Bt, K*C) f32 — flattened global-average-pool
    exp_ref : VMEM scratch (Bt, K*C) f32 — exp(logits - max) staging
    """
    Bt, K, C, HW = x_ref.shape
    inv_hw = 1.0 / HW

    x = x_ref[...]                                     # one lane-dense load of the block

    # 1) Global average pool of every branch, staged directly into the flat
    #    (k*C + c) lane layout expected by the fc weight (no concat / reshape).
    for k in range(K):
        xk = x[:, k].astype(jnp.float32)               # (Bt, C, HW), f32 accumulation
        gap_ref[:, k * C:(k + 1) * C] = jnp.sum(xk, axis=-1) * inv_hw

    # 2) fc: Conv2d(C->L, kernel=(K,1)) on the pooled stack == ONE matmul over the
    #    flattened (k, c) axis; BN scale is folded into the weight, bias added here.
    a = jnp.dot(gap_ref[...], wfc_ref[...], preferred_element_type=jnp.float32)
    a = jnp.maximum(a + bnb_ref[...], 0.0)             # (Bt, L)

    # 3) All K fcs 1x1 convs == ONE matmul producing every branch logit at once.
    logits = jnp.dot(a, wfcs_ref[...], preferred_element_type=jnp.float32)
    logits = logits + bfcs_ref[...]                    # (Bt, K*C), layout i*C + c

    # 4) Softmax over the branch axis i (groups of C lanes).  A per-row global max
    #    is a valid stabilizer because it is constant within every group.
    m = jnp.max(logits, axis=-1, keepdims=True)        # (Bt, 1)
    exp_ref[...] = jnp.exp(logits - m)
    denom = exp_ref[:, 0:C]
    for i in range(1, K):
        denom = denom + exp_ref[:, i * C:(i + 1) * C]
    inv_denom = 1.0 / denom                            # (Bt, C)

    # 5) Attention-weighted sum over branches (the bandwidth-bound part; f32 acc).
    acc = jnp.zeros((Bt, C, HW), jnp.float32)
    for k in range(K):
        att_k = exp_ref[:, k * C:(k + 1) * C] * inv_denom          # (Bt, C)
        acc = acc + x[:, k].astype(jnp.float32) * att_k[:, :, None]
    o_ref[...] = acc.astype(o_ref.dtype)


def agl_pallas(x4, wfc, bnb, wfcs, bfcs, *, block_b=None, out_dtype=jnp.float32):
    """x4: (B, K, C, HW) branch stack; returns (B, C, HW)."""
    B, K, C, HW = x4.shape
    KC, L = wfc.shape
    assert KC == K * C and wfcs.shape == (L, K * C)
    assert bnb.shape == (1, L) and bfcs.shape == (1, K * C)

    in_isz = jnp.dtype(x4.dtype).itemsize
    out_isz = jnp.dtype(out_dtype).itemsize

    def blk_bytes(bb):  # double-buffered x block + output block
        return 2 * bb * C * HW * (K * in_isz + out_isz)

    if block_b is None:
        # Largest divisor of B up to 8 (fills sublanes, amortizes per-step overhead),
        # shrunk if the double-buffered blocks would blow the 48 MiB VMEM budget
        # (v7x has only 64 MiB per core; v5e/v6e have 128 MiB).
        # NOTE(v7x): pass block_b explicitly so that B // block_b >= 2 parallel grid
        #            steps are available for the two TensorCores.
        block_b = min(B, 8)
        while B % block_b:
            block_b -= 1
        while block_b > 1 and blk_bytes(block_b) > (40 << 20):
            block_b = max(1, block_b // 2)
            while B % block_b:
                block_b -= 1
    assert B % block_b == 0
    grid = (B // block_b,)

    param_bytes = 4 * (wfc.size + bnb.size + wfcs.size + bfcs.size)
    vmem_limit = int(min(48 << 20,
                         max(16 << 20, blk_bytes(block_b) + 2 * param_bytes + (2 << 20))))

    return pl.pallas_call(
        agl_kernel,
        out_shape=jax.ShapeDtypeStruct((B, C, HW), out_dtype),
        grid=grid,
        in_specs=[
            pl.BlockSpec((block_b, K, C, HW), lambda b: (b, 0, 0, 0)),
            # constant-index parameter tiles: fetched once, stay resident in VMEM
            pl.BlockSpec((K * C, L), lambda b: (0, 0)),
            pl.BlockSpec((1, L), lambda b: (0, 0)),
            pl.BlockSpec((L, K * C), lambda b: (0, 0)),
            pl.BlockSpec((1, K * C), lambda b: (0, 0)),
        ],
        out_specs=pl.BlockSpec((block_b, C, HW), lambda b: (b, 0, 0)),
        scratch_shapes=[
            pltpu.VMEM((block_b, K * C), jnp.float32),   # flattened GAP
            pltpu.VMEM((block_b, K * C), jnp.float32),   # exp(logits - max)
        ],
        compiler_params=pltpu.CompilerParams(
            dimension_semantics=("parallel",),
            vmem_limit_bytes=vmem_limit,
        ),
    )(x4, wfc, bnb, wfcs, bfcs)


def fold_agl_params(fc_w, bn_gamma, bn_beta, bn_mean, bn_var, fcs_w, fcs_b, eps=1e-5):
    """Wrapper-side layout plumbing: fold eval-mode BN and flatten the conv weights.

    fc_w : (L, C, K)  Conv2d(C->L, kernel=(K,1), bias=False) weight (kW=1 squeezed)
    fcs_w: (K, C, L)  stacked Conv2d(L->C, 1x1) weights;   fcs_b: (K, C)
    """
    L, C, K = fc_w.shape
    scale = bn_gamma / jnp.sqrt(bn_var + eps)
    wfc = jnp.transpose(fc_w, (2, 1, 0)).reshape(K * C, L) * scale[None, :]   # rows: k*C+c
    bnb = (bn_beta - bn_mean * scale).reshape(1, L)
    wfcs = jnp.transpose(fcs_w, (2, 0, 1)).reshape(L, K * C)                  # cols: i*C+c
    bfcs = fcs_b.reshape(1, K * C)
    return (wfc.astype(jnp.float32), bnb.astype(jnp.float32),
            wfcs.astype(jnp.float32), bfcs.astype(jnp.float32))


def agl_reference(xs, fc_w, bn_gamma, bn_beta, bn_mean, bn_var, fcs_w, fcs_b, eps=1e-5):
    """Plain-JAX reference mirroring the PyTorch AGL forward (eval-mode BN)."""
    g = jnp.stack([jnp.mean(x, axis=(2, 3)) for x in xs], axis=2)        # (B, C, K)
    a = jnp.einsum('lck,bck->bl', fc_w, g, precision='highest')          # fc conv (K,1)
    a = (a - bn_mean) / jnp.sqrt(bn_var + eps) * bn_gamma + bn_beta
    a = jnp.maximum(a, 0.0)                                              # (B, L)
    logits = jnp.einsum('icl,bl->bic', fcs_w, a, precision='highest') + fcs_b[None]
    att = jax.nn.softmax(logits, axis=1)                                 # softmax over branches
    xst = jnp.stack(xs, axis=1)                                          # (B, K, C, H, W)
    return jnp.sum(xst * att[:, :, :, None, None], axis=1)               # (B, C, H, W)


if __name__ == "__main__":
    # Small shapes consistent with Bottleneck/KAConv: batch=2, channels=4,
    # spatial=16x16, branches = kernel_size**2 = 9, hidden L = max(C//16, 32) = 32.
    B, C, H, W = 2, 4, 16, 16
    K = 9
    reduce = 16
    L = max(C // reduce, 32)
    eps = 1e-5

    key = jax.random.PRNGKey(0)
    keys = jax.random.split(key, 8)

    # Branch feature maps (inside Bottleneck these are KAConv's 9 shifted 1x1-conv
    # + BN + ReLU outputs; synthetic here).
    xs = list(jax.random.normal(keys[0], (K, B, C, H, W), jnp.float32))

    # Module parameters (synthetic, shapes from AGL.__init__).
    fc_w = 0.1 * jax.random.normal(keys[1], (L, C, K), jnp.float32)      # Conv2d(C->L, (K,1)), no bias
    bn_gamma = 1.0 + 0.1 * jax.random.normal(keys[2], (L,), jnp.float32)
    bn_beta = 0.1 * jax.random.normal(keys[3], (L,), jnp.float32)
    bn_mean = 0.1 * jax.random.normal(keys[4], (L,), jnp.float32)
    bn_var = jax.nn.softplus(jax.random.normal(keys[5], (L,), jnp.float32)) + 0.5
    fcs_w = 0.1 * jax.random.normal(keys[6], (K, C, L), jnp.float32)     # K x Conv2d(L->C, 1x1)
    fcs_b = 0.1 * jax.random.normal(keys[7], (K, C), jnp.float32)

    # bf16 branch-tensor I/O (feedback: HBM-bandwidth bound); compute stays f32.
    x_packed = jnp.stack(xs, axis=1).astype(jnp.bfloat16).reshape(B, K, C, H * W)
    xs_q = [x.astype(jnp.bfloat16).astype(jnp.float32) for x in xs]      # same quantized values

    wfc, bnb, wfcs, bfcs = fold_agl_params(
        fc_w, bn_gamma, bn_beta, bn_mean, bn_var, fcs_w, fcs_b, eps)

    out_flat = agl_pallas(x_packed, wfc, bnb, wfcs, bfcs)                # (B, C, HW) f32
    out = jax.block_until_ready(out_flat.reshape(B, C, H, W))

    ref = agl_reference(xs_q, fc_w, bn_gamma, bn_beta, bn_mean, bn_var, fcs_w, fcs_b, eps)
    ref = jax.block_until_ready(ref)

    assert out.shape == (B, C, H, W)
    assert jnp.allclose(out, ref, atol=1e-4, rtol=1e-4), float(jnp.max(jnp.abs(out - ref)))

    print("KERNEL_OK")
</pallas_src>

<mosaic_0001>
module attributes {stable_mosaic.version = 11 : i64} {
  func.func @agl_kernel(%arg0: i32, %arg1: memref<2x9x4x256xbf16, #tpu.memory_space<vmem>>, %arg2: memref<36x32xf32, #tpu.memory_space<vmem>>, %arg3: memref<1x32xf32, #tpu.memory_space<vmem>>, %arg4: memref<32x36xf32, #tpu.memory_space<vmem>>, %arg5: memref<1x36xf32, #tpu.memory_space<vmem>>, %arg6: memref<2x4x256xf32, #tpu.memory_space<vmem>>, %arg7: memref<2x36xf32, #tpu.memory_space<vmem>>, %arg8: memref<2x36xf32, #tpu.memory_space<vmem>>) attributes {dimension_semantics = [#tpu.dimension_semantics<parallel>], iteration_bounds = array<i64: 1>, scalar_prefetch = 0 : i64, scratch_operands = 2 : i64, tpu.core_type = #tpu.core_type<tc>, window_params = [{transform_indices = @transform_0, window_bounds = array<i64: 2, 9, 4, 256>}, {pipeline_mode = #tpu.pipeline_mode<synchronous>, transform_indices = @transform_1, window_bounds = array<i64: 36, 32>}, {pipeline_mode = #tpu.pipeline_mode<synchronous>, transform_indices = @transform_2, window_bounds = array<i64: 1, 32>}, {pipeline_mode = #tpu.pipeline_mode<synchronous>, transform_indices = @transform_3, window_bounds = array<i64: 32, 36>}, {pipeline_mode = #tpu.pipeline_mode<synchronous>, transform_indices = @transform_4, window_bounds = array<i64: 1, 36>}, {transform_indices = @transform_5, window_bounds = array<i64: 2, 4, 256>}]} {
    %c0 = arith.constant 0 : index
    %c0_0 = arith.constant 0 : index
    %c0_1 = arith.constant 0 : index
    %c0_2 = arith.constant 0 : index
    %0 = vector.load %arg1[%c0, %c0_0, %c0_1, %c0_2] : memref<2x9x4x256xbf16, #tpu.memory_space<vmem>>, vector<2x9x4x256xbf16>
    %1 = vector.extract_strided_slice %0 {offsets = [0, 0, 0, 0], sizes = [2, 1, 4, 256], strides = [1, 1, 1, 1]} : vector<2x9x4x256xbf16> to vector<2x1x4x256xbf16>
    %2 = vector.shape_cast %1 : vector<2x1x4x256xbf16> to vector<2x4x256xbf16>
    %3 = arith.extf %2 : vector<2x4x256xbf16> to vector<2x4x256xf32>
    %cst = arith.constant dense<0.000000e+00> : vector<2x4xf32>
    %4 = vector.multi_reduction <add>, %3, %cst [2] : vector<2x4x256xf32> to vector<2x4xf32>
    %cst_3 = arith.constant 3.906250e-03 : f32
    %5 = vector.broadcast %cst_3 : f32 to vector<2x4xf32>
    %6 = arith.mulf %4, %5 : vector<2x4xf32>
    %c0_4 = arith.constant 0 : index
    %c0_5 = arith.constant 0 : index
    %7 = vector.load %arg7[%c0_4, %c0_5] : memref<2x36xf32, #tpu.memory_space<vmem>>, vector<2x4xf32>
    tpu.vector_store %arg7[%c0_4, %c0_5], %6 {strides = array<i32>} : memref<2x36xf32, #tpu.memory_space<vmem>>, vector<2x4xf32>,
    %8 = vector.extract_strided_slice %0 {offsets = [0, 1, 0, 0], sizes = [2, 1, 4, 256], strides = [1, 1, 1, 1]} : vector<2x9x4x256xbf16> to vector<2x1x4x256xbf16>
    %9 = vector.shape_cast %8 : vector<2x1x4x256xbf16> to vector<2x4x256xbf16>
    %10 = arith.extf %9 : vector<2x4x256xbf16> to vector<2x4x256xf32>
    %cst_6 = arith.constant dense<0.000000e+00> : vector<2x4xf32>
    %11 = vector.multi_reduction <add>, %10, %cst_6 [2] : vector<2x4x256xf32> to vector<2x4xf32>
    %cst_7 = arith.constant 3.906250e-03 : f32
    %12 = vector.broadcast %cst_7 : f32 to vector<2x4xf32>
    %13 = arith.mulf %11, %12 : vector<2x4xf32>
    %c0_8 = arith.constant 0 : index
    %c4 = arith.constant 4 : index
    %14 = vector.load %arg7[%c0_8, %c4] : memref<2x36xf32, #tpu.memory_space<vmem>>, vector<2x4xf32>
    tpu.vector_store %arg7[%c0_8, %c4], %13 {strides = array<i32>} : memref<2x36xf32, #tpu.memory_space<vmem>>, vector<2x4xf32>,
    %15 = vector.extract_strided_slice %0 {offsets = [0, 2, 0, 0], sizes = [2, 1, 4, 256], strides = [1, 1, 1, 1]} : vector<2x9x4x256xbf16> to vector<2x1x4x256xbf16>
    %16 = vector.shape_cast %15 : vector<2x1x4x256xbf16> to vector<2x4x256xbf16>
    %17 = arith.extf %16 : vector<2x4x256xbf16> to vector<2x4x256xf32>
    %cst_9 = arith.constant dense<0.000000e+00> : vector<2x4xf32>
    %18 = vector.multi_reduction <add>, %17, %cst_9 [2] : vector<2x4x256xf32> to vector<2x4xf32>
    %cst_10 = arith.constant 3.906250e-03 : f32
    %19 = vector.broadcast %cst_10 : f32 to vector<2x4xf32>
    %20 = arith.mulf %18, %19 : vector<2x4xf32>
    %c0_11 = arith.constant 0 : index
    %c8 = arith.constant 8 : index
    %21 = vector.load %arg7[%c0_11, %c8] : memref<2x36xf32, #tpu.memory_space<vmem>>, vector<2x4xf32>
    tpu.vector_store %arg7[%c0_11, %c8], %20 {strides = array<i32>} : memref<2x36xf32, #tpu.memory_space<vmem>>, vector<2x4xf32>,
    %22 = vector.extract_strided_slice %0 {offsets = [0, 3, 0, 0], sizes = [2, 1, 4, 256], strides = [1, 1, 1, 1]} : vector<2x9x4x256xbf16> to vector<2x1x4x256xbf16>
    %23 = vector.shape_cast %22 : vector<2x1x4x256xbf16> to vector<2x4x256xbf16>
    %24 = arith.extf %23 : vector<2x4x256xbf16> to vector<2x4x256xf32>
    %cst_12 = arith.constant dense<0.000000e+00> : vector<2x4xf32>
    %25 = vector.multi_reduction <add>, %24, %cst_12 [2] : vector<2x4x256xf32> to vector<2x4xf32>
    %cst_13 = arith.constant 3.906250e-03 : f32
    %26 = vector.broadcast %cst_13 : f32 to vector<2x4xf32>
    %27 = arith.mulf %25, %26 : vector<2x4xf32>
    %c0_14 = arith.constant 0 : index
    %c12 = arith.constant 12 : index
    %28 = vector.load %arg7[%c0_14, %c12] : memref<2x36xf32, #tpu.memory_space<vmem>>, vector<2x4xf32>
    tpu.vector_store %arg7[%c0_14, %c12], %27 {strides = array<i32>} : memref<2x36xf32, #tpu.memory_space<vmem>>, vector<2x4xf32>,
    %29 = vector.extract_strided_slice %0 {offsets = [0, 4, 0, 0], sizes = [2, 1, 4, 256], strides = [1, 1, 1, 1]} : vector<2x9x4x256xbf16> to vector<2x1x4x256xbf16>
    %30 = vector.shape_cast %29 : vector<2x1x4x256xbf16> to vector<2x4x256xbf16>
    %31 = arith.extf %30 : vector<2x4x256xbf16> to vector<2x4x256xf32>
    %cst_15 = arith.constant dense<0.000000e+00> : vector<2x4xf32>
    %32 = vector.multi_reduction <add>, %31, %cst_15 [2] : vector<2x4x256xf32> to vector<2x4xf32>
    %cst_16 = arith.constant 3.906250e-03 : f32
    %33 = vector.broadcast %cst_16 : f32 to vector<2x4xf32>
    %34 = arith.mulf %32, %33 : vector<2x4xf32>
    %c0_17 = arith.constant 0 : index
    %c16 = arith.constant 16 : index
    %35 = vector.load %arg7[%c0_17, %c16] : memref<2x36xf32, #tpu.memory_space<vmem>>, vector<2x4xf32>
    tpu.vector_store %arg7[%c0_17, %c16], %34 {strides = array<i32>} : memref<2x36xf32, #tpu.memory_space<vmem>>, vector<2x4xf32>,
    %36 = vector.extract_strided_slice %0 {offsets = [0, 5, 0, 0], sizes = [2, 1, 4, 256], strides = [1, 1, 1, 1]} : vector<2x9x4x256xbf16> to vector<2x1x4x256xbf16>
    %37 = vector.shape_cast %36 : vector<2x1x4x256xbf16> to vector<2x4x256xbf16>
    %38 = arith.extf %37 : vector<2x4x256xbf16> to vector<2x4x256xf32>
    %cst_18 = arith.constant dense<0.000000e+00> : vector<2x4xf32>
    %39 = vector.multi_reduction <add>, %38, %cst_18 [2] : vector<2x4x256xf32> to vector<2x4xf32>
    %cst_19 = arith.constant 3.906250e-03 : f32
    %40 = vector.broadcast %cst_19 : f32 to vector<2x4xf32>
    %41 = arith.mulf %39, %40 : vector<2x4xf32>
    %c0_20 = arith.constant 0 : index
    %c20 = arith.constant 20 : index
    %42 = vector.load %arg7[%c0_20, %c20] : memref<2x36xf32, #tpu.memory_space<vmem>>, vector<2x4xf32>
    tpu.vector_store %arg7[%c0_20, %c20], %41 {strides = array<i32>} : memref<2x36xf32, #tpu.memory_space<vmem>>, vector<2x4xf32>,
    %43 = vector.extract_strided_slice %0 {offsets = [0, 6, 0, 0], sizes = [2, 1, 4, 256], strides = [1, 1, 1, 1]} : vector<2x9x4x256xbf16> to vector<2x1x4x256xbf16>
    %44 = vector.shape_cast %43 : vector<2x1x4x256xbf16> to vector<2x4x256xbf16>
    %45 = arith.extf %44 : vector<2x4x256xbf16> to vector<2x4x256xf32>
    %cst_21 = arith.constant dense<0.000000e+00> : vector<2x4xf32>
    %46 = vector.multi_reduction <add>, %45, %cst_21 [2] : vector<2x4x256xf32> to vector<2x4xf32>
    %cst_22 = arith.constant 3.906250e-03 : f32
    %47 = vector.broadcast %cst_22 : f32 to vector<2x4xf32>
    %48 = arith.mulf %46, %47 : vector<2x4xf32>
    %c0_23 = arith.constant 0 : index
    %c24 = arith.constant 24 : index
    %49 = vector.load %arg7[%c0_23, %c24] : memref<2x36xf32, #tpu.memory_space<vmem>>, vector<2x4xf32>
    tpu.vector_store %arg7[%c0_23, %c24], %48 {strides = array<i32>} : memref<2x36xf32, #tpu.memory_space<vmem>>, vector<2x4xf32>,
    %50 = vector.extract_strided_slice %0 {offsets = [0, 7, 0, 0], sizes = [2, 1, 4, 256], strides = [1, 1, 1, 1]} : vector<2x9x4x256xbf16> to vector<2x1x4x256xbf16>
    %51 = vector.shape_cast %50 : vector<2x1x4x256xbf16> to vector<2x4x256xbf16>
    %52 = arith.extf %51 : vector<2x4x256xbf16> to vector<2x4x256xf32>
    %cst_24 = arith.constant dense<0.000000e+00> : vector<2x4xf32>
    %53 = vector.multi_reduction <add>, %52, %cst_24 [2] : vector<2x4x256xf32> to vector<2x4xf32>
    %cst_25 = arith.constant 3.906250e-03 : f32
    %54 = vector.broadcast %cst_25 : f32 to vector<2x4xf32>
    %55 = arith.mulf %53, %54 : vector<2x4xf32>
    %c0_26 = arith.constant 0 : index
    %c28 = arith.constant 28 : index
    %56 = vector.load %arg7[%c0_26, %c28] : memref<2x36xf32, #tpu.memory_space<vmem>>, vector<2x4xf32>
    tpu.vector_store %arg7[%c0_26, %c28], %55 {strides = array<i32>} : memref<2x36xf32, #tpu.memory_space<vmem>>, vector<2x4xf32>,
    %57 = vector.extract_strided_slice %0 {offsets = [0, 8, 0, 0], sizes = [2, 1, 4, 256], strides = [1, 1, 1, 1]} : vector<2x9x4x256xbf16> to vector<2x1x4x256xbf16>
    %58 = vector.shape_cast %57 : vector<2x1x4x256xbf16> to vector<2x4x256xbf16>
    %59 = arith.extf %58 : vector<2x4x256xbf16> to vector<2x4x256xf32>
    %cst_27 = arith.constant dense<0.000000e+00> : vector<2x4xf32>
    %60 = vector.multi_reduction <add>, %59, %cst_27 [2] : vector<2x4x256xf32> to vector<2x4xf32>
    %cst_28 = arith.constant 3.906250e-03 : f32
    %61 = vector.broadcast %cst_28 : f32 to vector<2x4xf32>
    %62 = arith.mulf %60, %61 : vector<2x4xf32>
    %c0_29 = arith.constant 0 : index
    %c32 = arith.constant 32 : index
    %63 = vector.load %arg7[%c0_29, %c32] : memref<2x36xf32, #tpu.memory_space<vmem>>, vector<2x4xf32>
    tpu.vector_store %arg7[%c0_29, %c32], %62 {strides = array<i32>} : memref<2x36xf32, #tpu.memory_space<vmem>>, vector<2x4xf32>,
    %c0_30 = arith.constant 0 : index
    %c0_31 = arith.constant 0 : index
    %64 = vector.load %arg7[%c0_30, %c0_31] : memref<2x36xf32, #tpu.memory_space<vmem>>, vector<2x36xf32>
    %c0_32 = arith.constant 0 : index
    %c0_33 = arith.constant 0 : index
    %65 = vector.load %arg2[%c0_32, %c0_33] : memref<36x32xf32, #tpu.memory_space<vmem>>, vector<36x32xf32>
    %cst_34 = arith.constant dense<0.000000e+00> : vector<2x32xf32>
    %66 = tpu.matmul %64, %65, %cst_34 {dimension_numbers = #tpu.dot_dimension_numbers<[1], [0], [0], [1], [0, 0, 1, 1], [], []>} : vector<2x36xf32>, vector<36x32xf32>, vector<2x32xf32> -> vector<2x32xf32>
    %c0_35 = arith.constant 0 : index
    %c0_36 = arith.constant 0 : index
    %67 = vector.load %arg3[%c0_35, %c0_36] : memref<1x32xf32, #tpu.memory_space<vmem>>, vector<1x32xf32>
    %68 = vector.broadcast %67 : vector<1x32xf32> to vector<2x32xf32>
    %69 = arith.addf %66, %68 : vector<2x32xf32>
    %cst_37 = arith.constant 0.000000e+00 : f32
    %70 = vector.broadcast %cst_37 : f32 to vector<2x32xf32>
    %71 = arith.maximumf %69, %70 : vector<2x32xf32>
    %c0_38 = arith.constant 0 : index
    %c0_39 = arith.constant 0 : index
    %72 = vector.load %arg4[%c0_38, %c0_39] : memref<32x36xf32, #tpu.memory_space<vmem>>, vector<32x36xf32>
    %cst_40 = arith.constant dense<0.000000e+00> : vector<2x36xf32>
    %73 = tpu.matmul %71, %72, %cst_40 {dimension_numbers = #tpu.dot_dimension_numbers<[1], [0], [0], [1], [0, 0, 1, 1], [], []>} : vector<2x32xf32>, vector<32x36xf32>, vector<2x36xf32> -> vector<2x36xf32>
    %c0_41 = arith.constant 0 : index
    %c0_42 = arith.constant 0 : index
    %74 = vector.load %arg5[%c0_41, %c0_42] : memref<1x36xf32, #tpu.memory_space<vmem>>, vector<1x36xf32>
    %75 = vector.broadcast %74 : vector<1x36xf32> to vector<2x36xf32>
    %76 = arith.addf %73, %75 : vector<2x36xf32>
    %cst_43 = arith.constant dense<0xFF800000> : vector<2xf32>
    %77 = vector.multi_reduction <maximumf>, %76, %cst_43 [1] : vector<2x36xf32> to vector<2xf32>
    %78 = vector.shape_cast %77 : vector<2xf32> to vector<2x1xf32>
    %79 = vector.broadcast %78 : vector<2x1xf32> to vector<2x36xf32>
    %80 = arith.subf %76, %79 : vector<2x36xf32>
    %81 = math.exp %80 : vector<2x36xf32>
    %c0_44 = arith.constant 0 : index
    %c0_45 = arith.constant 0 : index
    %82 = vector.load %arg8[%c0_44, %c0_45] : memref<2x36xf32, #tpu.memory_space<vmem>>, vector<2x36xf32>
    tpu.vector_store %arg8[%c0_44, %c0_45], %81 {strides = array<i32>} : memref<2x36xf32, #tpu.memory_space<vmem>>, vector<2x36xf32>,
    %c0_46 = arith.constant 0 : index
    %c0_47 = arith.constant 0 : index
    %83 = vector.load %arg8[%c0_46, %c0_47] : memref<2x36xf32, #tpu.memory_space<vmem>>, vector<2x4xf32>
    %c0_48 = arith.constant 0 : index
    %c4_49 = arith.constant 4 : index
    %84 = vector.load %arg8[%c0_48, %c4_49] : memref<2x36xf32, #tpu.memory_space<vmem>>, vector<2x4xf32>
    %85 = arith.addf %83, %84 : vector<2x4xf32>
    %c0_50 = arith.constant 0 : index
    %c8_51 = arith.constant 8 : index
    %86 = vector.load %arg8[%c0_50, %c8_51] : memref<2x36xf32, #tpu.memory_space<vmem>>, vector<2x4xf32>
    %87 = arith.addf %85, %86 : vector<2x4xf32>
    %c0_52 = arith.constant 0 : index
    %c12_53 = arith.constant 12 : index
    %88 = vector.load %arg8[%c0_52, %c12_53] : memref<2x36xf32, #tpu.memory_space<vmem>>, vector<2x4xf32>
    %89 = arith.addf %87, %88 : vector<2x4xf32>
    %c0_54 = arith.constant 0 : index
    %c16_55 = arith.constant 16 : index
    %90 = vector.load %arg8[%c0_54, %c16_55] : memref<2x36xf32, #tpu.memory_space<vmem>>, vector<2x4xf32>
    %91 = arith.addf %89, %90 : vector<2x4xf32>
    %c0_56 = arith.constant 0 : index
    %c20_57 = arith.constant 20 : index
    %92 = vector.load %arg8[%c0_56, %c20_57] : memref<2x36xf32, #tpu.memory_space<vmem>>, vector<2x4xf32>
    %93 = arith.addf %91, %92 : vector<2x4xf32>
    %c0_58 = arith.constant 0 : index
    %c24_59 = arith.constant 24 : index
    %94 = vector.load %arg8[%c0_58, %c24_59] : memref<2x36xf32, #tpu.memory_space<vmem>>, vector<2x4xf32>
    %95 = arith.addf %93, %94 : vector<2x4xf32>
    %c0_60 = arith.constant 0 : index
    %c28_61 = arith.constant 28 : index
    %96 = vector.load %arg8[%c0_60, %c28_61] : memref<2x36xf32, #tpu.memory_space<vmem>>, vector<2x4xf32>
    %97 = arith.addf %95, %96 : vector<2x4xf32>
    %c0_62 = arith.constant 0 : index
    %c32_63 = arith.constant 32 : index
    %98 = vector.load %arg8[%c0_62, %c32_63] : memref<2x36xf32, #tpu.memory_space<vmem>>, vector<2x4xf32>
    %99 = arith.addf %97, %98 : vector<2x4xf32>
    %cst_64 = arith.constant 1.000000e+00 : f32
    %100 = vector.broadcast %cst_64 : f32 to vector<2x4xf32>
    %101 = arith.divf %100, %99 : vector<2x4xf32>
    %cst_65 = arith.constant 0.000000e+00 : f32
    %102 = vector.broadcast %cst_65 : f32 to vector<2x4x256xf32>
    %c0_66 = arith.constant 0 : index
    %c0_67 = arith.constant 0 : index
    %103 = vector.load %arg8[%c0_66, %c0_67] : memref<2x36xf32, #tpu.memory_space<vmem>>, vector<2x4xf32>
    %104 = arith.mulf %103, %101 : vector<2x4xf32>
    %105 = vector.extract_strided_slice %0 {offsets = [0, 0, 0, 0], sizes = [2, 1, 4, 256], strides = [1, 1, 1, 1]} : vector<2x9x4x256xbf16> to vector<2x1x4x256xbf16>
    %106 = vector.shape_cast %105 : vector<2x1x4x256xbf16> to vector<2x4x256xbf16>
    %107 = arith.extf %106 : vector<2x4x256xbf16> to vector<2x4x256xf32>
    %108 = vector.shape_cast %104 : vector<2x4xf32> to vector<2x4x1xf32>
    %109 = vector.broadcast %108 : vector<2x4x1xf32> to vector<2x4x256xf32>
    %110 = arith.mulf %107, %109 : vector<2x4x256xf32>
    %111 = arith.addf %102, %110 : vector<2x4x256xf32>
    %c0_68 = arith.constant 0 : index
    %c4_69 = arith.constant 4 : index
    %112 = vector.load %arg8[%c0_68, %c4_69] : memref<2x36xf32, #tpu.memory_space<vmem>>, vector<2x4xf32>
    %113 = arith.mulf %112, %101 : vector<2x4xf32>
    %114 = vector.extract_strided_slice %0 {offsets = [0, 1, 0, 0], sizes = [2, 1, 4, 256], strides = [1, 1, 1, 1]} : vector<2x9x4x256xbf16> to vector<2x1x4x256xbf16>
    %115 = vector.shape_cast %114 : vector<2x1x4x256xbf16> to vector<2x4x256xbf16>
    %116 = arith.extf %115 : vector<2x4x256xbf16> to vector<2x4x256xf32>
    %117 = vector.shape_cast %113 : vector<2x4xf32> to vector<2x4x1xf32>
    %118 = vector.broadcast %117 : vector<2x4x1xf32> to vector<2x4x256xf32>
    %119 = arith.mulf %116, %118 : vector<2x4x256xf32>
    %120 = arith.addf %111, %119 : vector<2x4x256xf32>
    %c0_70 = arith.constant 0 : index
    %c8_71 = arith.constant 8 : index
    %121 = vector.load %arg8[%c0_70, %c8_71] : memref<2x36xf32, #tpu.memory_space<vmem>>, vector<2x4xf32>
    %122 = arith.mulf %121, %101 : vector<2x4xf32>
    %123 = vector.extract_strided_slice %0 {offsets = [0, 2, 0, 0], sizes = [2, 1, 4, 256], strides = [1, 1, 1, 1]} : vector<2x9x4x256xbf16> to vector<2x1x4x256xbf16>
    %124 = vector.shape_cast %123 : vector<2x1x4x256xbf16> to vector<2x4x256xbf16>
    %125 = arith.extf %124 : vector<2x4x256xbf16> to vector<2x4x256xf32>
    %126 = vector.shape_cast %122 : vector<2x4xf32> to vector<2x4x1xf32>
    %127 = vector.broadcast %126 : vector<2x4x1xf32> to vector<2x4x256xf32>
    %128 = arith.mulf %125, %127 : vector<2x4x256xf32>
    %129 = arith.addf %120, %128 : vector<2x4x256xf32>
    %c0_72 = arith.constant 0 : index
    %c12_73 = arith.constant 12 : index
    %130 = vector.load %arg8[%c0_72, %c12_73] : memref<2x36xf32, #tpu.memory_space<vmem>>, vector<2x4xf32>
    %131 = arith.mulf %130, %101 : vector<2x4xf32>
    %132 = vector.extract_strided_slice %0 {offsets = [0, 3, 0, 0], sizes = [2, 1, 4, 256], strides = [1, 1, 1, 1]} : vector<2x9x4x256xbf16> to vector<2x1x4x256xbf16>
    %133 = vector.shape_cast %132 : vector<2x1x4x256xbf16> to vector<2x4x256xbf16>
    %134 = arith.extf %133 : vector<2x4x256xbf16> to vector<2x4x256xf32>
    %135 = vector.shape_cast %131 : vector<2x4xf32> to vector<2x4x1xf32>
    %136 = vector.broadcast %135 : vector<2x4x1xf32> to vector<2x4x256xf32>
    %137 = arith.mulf %134, %136 : vector<2x4x256xf32>
    %138 = arith.addf %129, %137 : vector<2x4x256xf32>
    %c0_74 = arith.constant 0 : index
    %c16_75 = arith.constant 16 : index
    %139 = vector.load %arg8[%c0_74, %c16_75] : memref<2x36xf32, #tpu.memory_space<vmem>>, vector<2x4xf32>
    %140 = arith.mulf %139, %101 : vector<2x4xf32>
    %141 = vector.extract_strided_slice %0 {offsets = [0, 4, 0, 0], sizes = [2, 1, 4, 256], strides = [1, 1, 1, 1]} : vector<2x9x4x256xbf16> to vector<2x1x4x256xbf16>
    %142 = vector.shape_cast %141 : vector<2x1x4x256xbf16> to vector<2x4x256xbf16>
    %143 = arith.extf %142 : vector<2x4x256xbf16> to vector<2x4x256xf32>
    %144 = vector.shape_cast %140 : vector<2x4xf32> to vector<2x4x1xf32>
    %145 = vector.broadcast %144 : vector<2x4x1xf32> to vector<2x4x256xf32>
    %146 = arith.mulf %143, %145 : vector<2x4x256xf32>
    %147 = arith.addf %138, %146 : vector<2x4x256xf32>
    %c0_76 = arith.constant 0 : index
    %c20_77 = arith.constant 20 : index
    %148 = vector.load %arg8[%c0_76, %c20_77] : memref<2x36xf32, #tpu.memory_space<vmem>>, vector<2x4xf32>
    %149 = arith.mulf %148, %101 : vector<2x4xf32>
    %150 = vector.extract_strided_slice %0 {offsets = [0, 5, 0, 0], sizes = [2, 1, 4, 256], strides = [1, 1, 1, 1]} : vector<2x9x4x256xbf16> to vector<2x1x4x256xbf16>
    %151 = vector.shape_cast %150 : vector<2x1x4x256xbf16> to vector<2x4x256xbf16>
    %152 = arith.extf %151 : vector<2x4x256xbf16> to vector<2x4x256xf32>
    %153 = vector.shape_cast %149 : vector<2x4xf32> to vector<2x4x1xf32>
    %154 = vector.broadcast %153 : vector<2x4x1xf32> to vector<2x4x256xf32>
    %155 = arith.mulf %152, %154 : vector<2x4x256xf32>
    %156 = arith.addf %147, %155 : vector<2x4x256xf32>
    %c0_78 = arith.constant 0 : index
    %c24_79 = arith.constant 24 : index
    %157 = vector.load %arg8[%c0_78, %c24_79] : memref<2x36xf32, #tpu.memory_space<vmem>>, vector<2x4xf32>
    %158 = arith.mulf %157, %101 : vector<2x4xf32>
    %159 = vector.extract_strided_slice %0 {offsets = [0, 6, 0, 0], sizes = [2, 1, 4, 256], strides = [1, 1, 1, 1]} : vector<2x9x4x256xbf16> to vector<2x1x4x256xbf16>
    %160 = vector.shape_cast %159 : vector<2x1x4x256xbf16> to vector<2x4x256xbf16>
    %161 = arith.extf %160 : vector<2x4x256xbf16> to vector<2x4x256xf32>
    %162 = vector.shape_cast %158 : vector<2x4xf32> to vector<2x4x1xf32>
    %163 = vector.broadcast %162 : vector<2x4x1xf32> to vector<2x4x256xf32>
    %164 = arith.mulf %161, %163 : vector<2x4x256xf32>
    %165 = arith.addf %156, %164 : vector<2x4x256xf32>
    %c0_80 = arith.constant 0 : index
    %c28_81 = arith.constant 28 : index
    %166 = vector.load %arg8[%c0_80, %c28_81] : memref<2x36xf32, #tpu.memory_space<vmem>>, vector<2x4xf32>
    %167 = arith.mulf %166, %101 : vector<2x4xf32>
    %168 = vector.extract_strided_slice %0 {offsets = [0, 7, 0, 0], sizes = [2, 1, 4, 256], strides = [1, 1, 1, 1]} : vector<2x9x4x256xbf16> to vector<2x1x4x256xbf16>
    %169 = vector.shape_cast %168 : vector<2x1x4x256xbf16> to vector<2x4x256xbf16>
    %170 = arith.extf %169 : vector<2x4x256xbf16> to vector<2x4x256xf32>
    %171 = vector.shape_cast %167 : vector<2x4xf32> to vector<2x4x1xf32>
    %172 = vector.broadcast %171 : vector<2x4x1xf32> to vector<2x4x256xf32>
    %173 = arith.mulf %170, %172 : vector<2x4x256xf32>
    %174 = arith.addf %165, %173 : vector<2x4x256xf32>
    %c0_82 = arith.constant 0 : index
    %c32_83 = arith.constant 32 : index
    %175 = vector.load %arg8[%c0_82, %c32_83] : memref<2x36xf32, #tpu.memory_space<vmem>>, vector<2x4xf32>
    %176 = arith.mulf %175, %101 : vector<2x4xf32>
    %177 = vector.extract_strided_slice %0 {offsets = [0, 8, 0, 0], sizes = [2, 1, 4, 256], strides = [1, 1, 1, 1]} : vector<2x9x4x256xbf16> to vector<2x1x4x256xbf16>
    %178 = vector.shape_cast %177 : vector<2x1x4x256xbf16> to vector<2x4x256xbf16>
    %179 = arith.extf %178 : vector<2x4x256xbf16> to vector<2x4x256xf32>
    %180 = vector.shape_cast %176 : vector<2x4xf32> to vector<2x4x1xf32>
    %181 = vector.broadcast %180 : vector<2x4x1xf32> to vector<2x4x256xf32>
    %182 = arith.mulf %179, %181 : vector<2x4x256xf32>
    %183 = arith.addf %174, %182 : vector<2x4x256xf32>
    %c0_84 = arith.constant 0 : index
    %c0_85 = arith.constant 0 : index
    %c0_86 = arith.constant 0 : index
    %184 = vector.load %arg6[%c0_84, %c0_85, %c0_86] : memref<2x4x256xf32, #tpu.memory_space<vmem>>, vector<2x4x256xf32>
    tpu.vector_store %arg6[%c0_84, %c0_85, %c0_86], %183 {strides = array<i32>} : memref<2x4x256xf32, #tpu.memory_space<vmem>>, vector<2x4x256xf32>,
    return
  }
  func.func @transform_0(%arg0: i32) -> (i32, i32, i32, i32) {
    %c0_i32 = arith.constant 0 : i32
    %c0_i32_0 = arith.constant 0 : i32
    %c0_i32_1 = arith.constant 0 : i32
    %c0_i32_2 = arith.constant 0 : i32
    return %arg0, %c0_i32, %c0_i32_0, %c0_i32_1 : i32, i32, i32, i32
  }
  func.func @transform_1(%arg0: i32) -> (i32, i32) {
    %c0_i32 = arith.constant 0 : i32
    %c0_i32_0 = arith.constant 0 : i32
    %c0_i32_1 = arith.constant 0 : i32
    return %c0_i32, %c0_i32_0 : i32, i32
  }
  func.func @transform_2(%arg0: i32) -> (i32, i32) {
    %c0_i32 = arith.constant 0 : i32
    %c0_i32_0 = arith.constant 0 : i32
    %c0_i32_1 = arith.constant 0 : i32
    return %c0_i32, %c0_i32_0 : i32, i32
  }
  func.func @transform_3(%arg0: i32) -> (i32, i32) {
    %c0_i32 = arith.constant 0 : i32
    %c0_i32_0 = arith.constant 0 : i32
    %c0_i32_1 = arith.constant 0 : i32
    return %c0_i32, %c0_i32_0 : i32, i32
  }
  func.func @transform_4(%arg0: i32) -> (i32, i32) {
    %c0_i32 = arith.constant 0 : i32
    %c0_i32_0 = arith.constant 0 : i32
    %c0_i32_1 = arith.constant 0 : i32
    return %c0_i32, %c0_i32_0 : i32, i32
  }
  func.func @transform_5(%arg0: i32) -> (i32, i32, i32) {
    %c0_i32 = arith.constant 0 : i32
    %c0_i32_0 = arith.constant 0 : i32
    %c0_i32_1 = arith.constant 0 : i32
    return %arg0, %c0_i32, %c0_i32_0 : i32, i32, i32
  }
}

</mosaic_0001>

<llo_original>
// kernel: tpu_custom_call.1
$region0: #{tpu_custom_call.1}
  #allocation0 [shape = 'u32[]', space=smem, size = 0x4, offset = 0x4, fixed_abs, tag = 'smem constant byte address 0x4 - core index']
  #allocation1 [shape = 'u32[72,128]{1,0:T(1,128)}', space=vmem, size = 0x9000, scoped, tag = 'internal scratch']
  #allocation2 [shape = 'f32[2,36]{1,0:T(2,128)}', space=vmem, size = 0x400, scoped, tag = 'scratch operand']
  #allocation3 [shape = 'f32[2,36]{1,0:T(2,128)}', space=vmem, size = 0x400, scoped, tag = 'scratch operand']
  %s0 = inlined_call_operand.vmem [shape: bf16[2,9,4,256], index: 0, kind: input, shape index: {}]
  %s1 = inlined_call_operand.vmem [shape: f32[36,32], index: 1, kind: input, shape index: {}]
  %s2 = inlined_call_operand.vmem [shape: f32[1,32], index: 2, kind: input, shape index: {}]
  %s3 = inlined_call_operand.hbm [shape: f32[32,36], index: 3, kind: input, shape index: {}]
  %s4 = inlined_call_operand.vmem [shape: f32[1,36], index: 4, kind: input, shape index: {}]
  %s5 = inlined_call_operand.hbm [shape: f32[2,4,256], index: 5, kind: output, shape index: {}]
  %s6 = sld [smem:[#allocation0]]
  $region34: #{tpu_custom_call.1} parent=0
    _
  %s8 = ssub.s32 1, %s6
  %s9 = scalar_select 0, %s8, %s6
  $region1: #{tpu_custom_call.1} parent=0
    #allocation4 [shape = 'u8[16384]{0}', space=vmem, size = 0x4000, scoped, tag = 'input window, operand 3, single buffered']
    #allocation5 [shape = 's32[1]{0}', space=sflag, size = 0x4, scoped, tag = 'scoped memory for tpu_custom_call.1']
    #allocation6 [shape = 's32[1]{0}', space=sflag, size = 0x4, scoped, tag = 'scoped memory for tpu_custom_call.1']
    #allocation7 [shape = 'u8[8192]{0}', space=vmem, size = 0x2000, scoped, tag = 'output window, operand 0, single buffered']
    %10 = vsyncpa [#allocation5], 0
    %11 = vsyncpa [#allocation6], 0
    // Predicated region
    $region2: #{tpu_custom_call.1} parent=1 // pred_check
      _
    $region3: #{tpu_custom_call.1} parent=1 // pred_check_branch
      %13 = sbr.rel (0) target = $region5
    $region4: #{tpu_custom_call.1} parent=1 // pred_region
      _
    $region5: #{tpu_custom_call.1} parent=1 // pred_fallthru
      _
    // Predicated region
    $region6: #{tpu_custom_call.1} parent=1 // pred_check
      _
    $region7: #{tpu_custom_call.1} parent=1 // pred_check_branch
      %15 = sbr.rel (0) target = $region9
    $region8: #{tpu_custom_call.1} parent=1 // pred_region
      _
    $region9: #{tpu_custom_call.1} parent=1 // pred_fallthru
      _
    // Predicated region
    $region10: #{tpu_custom_call.1} parent=1 // pred_check
      _
    $region11: #{tpu_custom_call.1} parent=1 // pred_check_branch
      %17 = sbr.rel (0) target = $region13
    $region12: #{tpu_custom_call.1} parent=1 // pred_region
      _
    $region13: #{tpu_custom_call.1} parent=1 // pred_fallthru
      _
    // Predicated region
    $region14: #{tpu_custom_call.1} parent=1 // pred_check
      _
    $region15: #{tpu_custom_call.1} parent=1 // pred_check_branch
      %19 = sbr.rel (0) target = $region17
    $region16: #{tpu_custom_call.1} parent=1 // pred_region
      %21 = vsyncadd [#allocation5], 0
      %s22 = sshll.u32 %s3, 4
      %s23 = int_to_ptr.hbm [resolvable:$true] %s22
      %s24 = sshll.u32 [#allocation4], 4
      %s25 = int_to_ptr.vmem [resolvable:$true] %s24
      %30 = dma.hbm_to_vmem [thread:$0]  %s23, 512, %s25, [#allocation5], 128, 128, 8
    $region17: #{tpu_custom_call.1} parent=1 // pred_fallthru
      _
    // Predicated region
    $region18: #{tpu_custom_call.1} parent=1 // pred_check
      _
    $region19: #{tpu_custom_call.1} parent=1 // pred_check_branch
      %32 = sbr.rel (0) target = $region21
    $region20: #{tpu_custom_call.1} parent=1 // pred_region
      _
    $region21: #{tpu_custom_call.1} parent=1 // pred_fallthru
      _
    // Predicated region
    $region22: #{tpu_custom_call.1} parent=1 // pred_check
      _
    $region23: #{tpu_custom_call.1} parent=1 // pred_check_branch
      %34 = sbr.rel (0) target = $region25
    $region24: #{tpu_custom_call.1} parent=1 // pred_region
      %36 = dma.done [#allocation5], 512
    $region25: #{tpu_custom_call.1} parent=1 // pred_fallthru
      _
    %v37 = vld [vmem:[%s0] sm:$0xf]
    %v38 = vld [vmem:[%s0 + $0x4] sm:$0xf]
    %v39 = vld [vmem:[%s0 + $0x8] sm:$0xf]
    %v40 = vld [vmem:[%s0 + $0xc] sm:$0xf]
    %v41 = vld [vmem:[%s0 + $0x10] sm:$0xf]
    %v42 = vld [vmem:[%s0 + $0x14] sm:$0xf]
    %v43 = vld [vmem:[%s0 + $0x18] sm:$0xf]
    %v44 = vld [vmem:[%s0 + $0x1c] sm:$0xf]
    %v45 = vld [vmem:[%s0 + $0x20] sm:$0xf]
    %v46 = vld [vmem:[%s0 + $0x24] sm:$0xf]
    %v47 = vld [vmem:[%s0 + $0x28] sm:$0xf]
    %v48 = vld [vmem:[%s0 + $0x2c] sm:$0xf]
    %v49 = vld [vmem:[%s0 + $0x30] sm:$0xf]
    %v50 = vld [vmem:[%s0 + $0x34] sm:$0xf]
    %v51 = vld [vmem:[%s0 + $0x38] sm:$0xf]
    %v52 = vld [vmem:[%s0 + $0x3c] sm:$0xf]
    %v53 = vld [vmem:[%s0 + $0x40] sm:$0xf]
    %v54 = vld [vmem:[%s0 + $0x44] sm:$0xf]
    %v55 = vunpack.c.l.bf16 %v37
    %v56 = vunpack.c.l.bf16 %v46
    %59 = vst [vmem:[#allocation1] ss:$2 sm:$0xff] %v55
    %v60 = vld.sshfl [vmem:[#allocation1] sm:$0xff pattern:$0x75316420]
    %v61 = vld.sshfl [vmem:[#allocation1 + $0x8] sm:$0xff pattern:$0x75316420]
    %s62 = scalar_lea.vmem [#allocation1], 16
    %63 = vst [vmem:[%s62] ss:$2 sm:$0xff] %v56
    %v64 = vld.sshfl [vmem:[#allocation1 + $0x10] sm:$0xff pattern:$0x75316420]
    %v65 = vld.sshfl [vmem:[#allocation1 + $0x18] sm:$0xff pattern:$0x75316420]
    %vm70 = vcmask 1043456
    %v71 = vsel %vm70, %v60, 0.0
    %v72 = vsel %vm70, %v61, 0.0
    %v73 = vadd.f32 %v71, %v72
    %74 = vadd.xlane.f32.xlu0 %v73
    %v75 = vpop.xlane.xlu0 %74
    %v76 = vsel %vm70, %v64, 0.0
    %v77 = vsel %vm70, %v65, 0.0
    %v78 = vadd.f32 %v76, %v77
    %79 = vadd.xlane.f32.xlu0 %v78
    %v80 = vpop.xlane.xlu0 %79
    %v81 = vmul.f32 %v75, 0.00390625
    %v82 = vmul.f32 %v80, 0.00390625
    %v85 = vlaneseq
    %v86 = vand.u32 %v85, 127
    %v87 = vperm.slane %v81, %v86
    %v88 = vperm.slane %v82, %v86
    %vm89 = vcmask 1041409
    %v90 = vsel %vm89, %v88, %v87
    %vm92 = vcmask 25600
    %93 = vst.msk [vmem:[#allocation2] sm:$0x3] %vm92, %v90
    %v94 = vunpack.c.l.bf16 %v38
    %v95 = vunpack.c.l.bf16 %v47
    %98 = vst [vmem:[#allocation1] ss:$2 sm:$0xff] %v94
    %v99 = vld.sshfl [vmem:[#allocation1] sm:$0xff pattern:$0x75316420]
    %v100 = vld.sshfl [vmem:[#allocation1 + $0x8] sm:$0xff pattern:$0x75316420]
    %s101 = scalar_lea.vmem [#allocation1], 16
    %102 = vst [vmem:[%s101] ss:$2 sm:$0xff] %v95
    %v103 = vld.sshfl [vmem:[#allocation1 + $0x10] sm:$0xff pattern:$0x75316420]
    %v104 = vld.sshfl [vmem:[#allocation1 + $0x18] sm:$0xff pattern:$0x75316420]
    %v109 = vsel %vm70, %v99, 0.0
    %v110 = vsel %vm70, %v100, 0.0
    %v111 = vadd.f32 %v109, %v110
    %112 = vadd.xlane.f32.xlu0 %v111
    %v113 = vpop.xlane.xlu0 %112
    %v114 = vsel %vm70, %v103, 0.0
    %v115 = vsel %vm70, %v104, 0.0
    %v116 = vadd.f32 %v114, %v115
    %117 = vadd.xlane.f32.xlu0 %v116
    %v118 = vpop.xlane.xlu0 %117
    %v119 = vmul.f32 %v113, 0.00390625
    %v120 = vmul.f32 %v118, 0.00390625
    %v123 = vadd.s32 %v86, 4294967292
    %v124 = vperm.slane %v119, %v123
    %v125 = vperm.slane %v120, %v123
    %v126 = vsel %vm89, %v125, %v124
    %vm128 = vcmask 58400
    %129 = vst.msk [vmem:[#allocation2] sm:$0x3] %vm128, %v126
    %v130 = vunpack.c.l.bf16 %v39
    %v131 = vunpack.c.l.bf16 %v48
    %134 = vst [vmem:[#allocation1] ss:$2 sm:$0xff] %v130
    %v135 = vld.sshfl [vmem:[#allocation1] sm:$0xff pattern:$0x75316420]
    %v136 = vld.sshfl [vmem:[#allocation1 + $0x8] sm:$0xff pattern:$0x75316420]
    %s137 = scalar_lea.vmem [#allocation1], 16
    %138 = vst [vmem:[%s137] ss:$2 sm:$0xff] %v131
    %v139 = vld.sshfl [vmem:[#allocation1 + $0x10] sm:$0xff pattern:$0x75316420]
    %v140 = vld.sshfl [vmem:[#allocation1 + $0x18] sm:$0xff pattern:$0x75316420]
    %v145 = vsel %vm70, %v135, 0.0
    %v146 = vsel %vm70, %v136, 0.0
    %v147 = vadd.f32 %v145, %v146
    %148 = vadd.xlane.f32.xlu0 %v147
    %v149 = vpop.xlane.xlu0 %148
    %v150 = vsel %vm70, %v139, 0.0
    %v151 = vsel %vm70, %v140, 0.0
    %v152 = vadd.f32 %v150, %v151
    %153 = vadd.xlane.f32.xlu0 %v152
    %v154 = vpop.xlane.xlu0 %153
    %v155 = vmul.f32 %v149, 0.00390625
    %v156 = vmul.f32 %v154, 0.00390625
    %v159 = vadd.s32 %v86, 4294967288
    %v160 = vperm.slane %v155, %v159
    %v161 = vperm.slane %v156, %v159
    %v162 = vsel %vm89, %v161, %v160
    %vm164 = vcmask 91200
    %165 = vst.msk [vmem:[#allocation2] sm:$0x3] %vm164, %v162
    %v166 = vunpack.c.l.bf16 %v40
    %v167 = vunpack.c.l.bf16 %v49
    %170 = vst [vmem:[#allocation1] ss:$2 sm:$0xff] %v166
    %v171 = vld.sshfl [vmem:[#allocation1] sm:$0xff pattern:$0x75316420]
    %v172 = vld.sshfl [vmem:[#allocation1 + $0x8] sm:$0xff pattern:$0x75316420]
    %s173 = scalar_lea.vmem [#allocation1], 16
    %174 = vst [vmem:[%s173] ss:$2 sm:$0xff] %v167
    %v175 = vld.sshfl [vmem:[#allocation1 + $0x10] sm:$0xff pattern:$0x75316420]
    %v176 = vld.sshfl [vmem:[#allocation1 + $0x18] sm:$0xff pattern:$0x75316420]
    %v181 = vsel %vm70, %v171, 0.0
    %v182 = vsel %vm70, %v172, 0.0
    %v183 = vadd.f32 %v181, %v182
    %184 = vadd.xlane.f32.xlu0 %v183
    %v185 = vpop.xlane.xlu0 %184
    %v186 = vsel %vm70, %v175, 0.0
    %v187 = vsel %vm70, %v176, 0.0
    %v188 = vadd.f32 %v186, %v187
    %189 = vadd.xlane.f32.xlu0 %v188
    %v190 = vpop.xlane.xlu0 %189
    %v191 = vmul.f32 %v185, 0.00390625
    %v192 = vmul.f32 %v190, 0.00390625
    %v195 = vadd.s32 %v86, 4294967284
    %v196 = vperm.slane %v191, %v195
    %v197 = vperm.slane %v192, %v195
    %v198 = vsel %vm89, %v197, %v196
    %vm200 = vcmask 124000
    %201 = vst.msk [vmem:[#allocation2] sm:$0x3] %vm200, %v198
    %v202 = vunpack.c.l.bf16 %v41
    %v203 = vunpack.c.l.bf16 %v50
    %206 = vst [vmem:[#allocation1] ss:$2 sm:$0xff] %v202
    %v207 = vld.sshfl [vmem:[#allocation1] sm:$0xff pattern:$0x75316420]
    %v208 = vld.sshfl [vmem:[#allocation1 + $0x8] sm:$0xff pattern:$0x75316420]
    %s209 = scalar_lea.vmem [#allocation1], 16
    %210 = vst [vmem:[%s209] ss:$2 sm:$0xff] %v203
    %v211 = vld.sshfl [vmem:[#allocation1 + $0x10] sm:$0xff pattern:$0x75316420]
    %v212 = vld.sshfl [vmem:[#allocation1 + $0x18] sm:$0xff pattern:$0x75316420]
    %v217 = vsel %vm70, %v207, 0.0
    %v218 = vsel %vm70, %v208, 0.0
    %v219 = vadd.f32 %v217, %v218
    %220 = vadd.xlane.f32.xlu0 %v219
    %v221 = vpop.xlane.xlu0 %220
    %v222 = vsel %vm70, %v211, 0.0
    %v223 = vsel %vm70, %v212, 0.0
    %v224 = vadd.f32 %v222, %v223
    %225 = vadd.xlane.f32.xlu0 %v224
    %v226 = vpop.xlane.xlu0 %225
    %v227 = vmul.f32 %v221, 0.00390625
    %v228 = vmul.f32 %v226, 0.00390625
    %v231 = vadd.s32 %v86, 4294967280
    %v232 = vperm.slane %v227, %v231
    %v233 = vperm.slane %v228, %v231
    %v234 = vsel %vm89, %v233, %v232
    %vm236 = vcmask 156800
    %237 = vst.msk [vmem:[#allocation2] sm:$0x3] %vm236, %v234
    %v238 = vunpack.c.l.bf16 %v42
    %v239 = vunpack.c.l.bf16 %v51
    %242 = vst [vmem:[#allocation1] ss:$2 sm:$0xff] %v238
    %v243 = vld.sshfl [vmem:[#allocation1] sm:$0xff pattern:$0x75316420]
    %v244 = vld.sshfl [vmem:[#allocation1 + $0x8] sm:$0xff pattern:$0x75316420]
    %s245 = scalar_lea.vmem [#allocation1], 16
    %246 = vst [vmem:[%s245] ss:$2 sm:$0xff] %v239
    %v247 = vld.sshfl [vmem:[#allocation1 + $0x10] sm:$0xff pattern:$0x75316420]
    %v248 = vld.sshfl [vmem:[#allocation1 + $0x18] sm:$0xff pattern:$0x75316420]
    %v253 = vsel %vm70, %v243, 0.0
    %v254 = vsel %vm70, %v244, 0.0
    %v255 = vadd.f32 %v253, %v254
    %256 = vadd.xlane.f32.xlu0 %v255
    %v257 = vpop.xlane.xlu0 %256
    %v258 = vsel %vm70, %v247, 0.0
    %v259 = vsel %vm70, %v248, 0.0
    %v260 = vadd.f32 %v258, %v259
    %261 = vadd.xlane.f32.xlu0 %v260
    %v262 = vpop.xlane.xlu0 %261
    %v263 = vmul.f32 %v257, 0.00390625
    %v264 = vmul.f32 %v262, 0.00390625
    %v267 = vadd.s32 %v86, 4294967276
    %v268 = vperm.slane %v263, %v267
    %v269 = vperm.slane %v264, %v267
    %v270 = vsel %vm89, %v269, %v268
    %vm272 = vcmask 189600
    %273 = vst.msk [vmem:[#allocation2] sm:$0x3] %vm272, %v270
    %v274 = vunpack.c.l.bf16 %v43
    %v275 = vunpack.c.l.bf16 %v52
    %278 = vst [vmem:[#allocation1] ss:$2 sm:$0xff] %v274
    %v279 = vld.sshfl [vmem:[#allocation1] sm:$0xff pattern:$0x75316420]
    %v280 = vld.sshfl [vmem:[#allocation1 + $0x8] sm:$0xff pattern:$0x75316420]
    %s281 = scalar_lea.vmem [#allocation1], 16
    %282 = vst [vmem:[%s281] ss:$2 sm:$0xff] %v275
    %v283 = vld.sshfl [vmem:[#allocation1 + $0x10] sm:$0xff pattern:$0x75316420]
    %v284 = vld.sshfl [vmem:[#allocation1 + $0x18] sm:$0xff pattern:$0x75316420]
    %v289 = vsel %vm70, %v279, 0.0
    %v290 = vsel %vm70, %v280, 0.0
    %v291 = vadd.f32 %v289, %v290
    %292 = vadd.xlane.f32.xlu0 %v291
    %v293 = vpop.xlane.xlu0 %292
    %v294 = vsel %vm70, %v283, 0.0
    %v295 = vsel %vm70, %v284, 0.0
    %v296 = vadd.f32 %v294, %v295
    %297 = vadd.xlane.f32.xlu0 %v296
    %v298 = vpop.xlane.xlu0 %297
    %v299 = vmul.f32 %v293, 0.00390625
    %v300 = vmul.f32 %v298, 0.00390625
    %v303 = vadd.s32 %v86, 4294967272
    %v304 = vperm.slane %v299, %v303
    %v305 = vperm.slane %v300, %v303
    %v306 = vsel %vm89, %v305, %v304
    %vm308 = vcmask 222400
    %309 = vst.msk [vmem:[#allocation2] sm:$0x3] %vm308, %v306
    %v310 = vunpack.c.l.bf16 %v44
    %v311 = vunpack.c.l.bf16 %v53
    %314 = vst [vmem:[#allocation1] ss:$2 sm:$0xff] %v310
    %v315 = vld.sshfl [vmem:[#allocation1] sm:$0xff pattern:$0x75316420]
    %v316 = vld.sshfl [vmem:[#allocation1 + $0x8] sm:$0xff pattern:$0x75316420]
    %s317 = scalar_lea.vmem [#allocation1], 16
    %318 = vst [vmem:[%s317] ss:$2 sm:$0xff] %v311
    %v319 = vld.sshfl [vmem:[#allocation1 + $0x10] sm:$0xff pattern:$0x75316420]
    %v320 = vld.sshfl [vmem:[#allocation1 + $0x18] sm:$0xff pattern:$0x75316420]
    %v325 = vsel %vm70, %v315, 0.0
    %v326 = vsel %vm70, %v316, 0.0
    %v327 = vadd.f32 %v325, %v326
    %328 = vadd.xlane.f32.xlu0 %v327
    %v329 = vpop.xlane.xlu0 %328
    %v330 = vsel %vm70, %v319, 0.0
    %v331 = vsel %vm70, %v320, 0.0
    %v332 = vadd.f32 %v330, %v331
    %333 = vadd.xlane.f32.xlu0 %v332
    %v334 = vpop.xlane.xlu0 %333
    %v335 = vmul.f32 %v329, 0.00390625
    %v336 = vmul.f32 %v334, 0.00390625
    %v339 = vadd.s32 %v86, 4294967268
    %v340 = vperm.slane %v335, %v339
    %v341 = vperm.slane %v336, %v339
    %v342 = vsel %vm89, %v341, %v340
    %vm344 = vcmask 255200
    %345 = vst.msk [vmem:[#allocation2] sm:$0x3] %vm344, %v342
    %v346 = vunpack.c.l.bf16 %v45
    %v347 = vunpack.c.l.bf16 %v54
    %350 = vst [vmem:[#allocation1] ss:$2 sm:$0xff] %v346
    %v351 = vld.sshfl [vmem:[#allocation1] sm:$0xff pattern:$0x75316420]
    %v352 = vld.sshfl [vmem:[#allocation1 + $0x8] sm:$0xff pattern:$0x75316420]
    %s353 = scalar_lea.vmem [#allocation1], 16
    %354 = vst [vmem:[%s353] ss:$2 sm:$0xff] %v347
    %v355 = vld.sshfl [vmem:[#allocation1 + $0x10] sm:$0xff pattern:$0x75316420]
    %v356 = vld.sshfl [vmem:[#allocation1 + $0x18] sm:$0xff pattern:$0x75316420]
    %v361 = vsel %vm70, %v351, 0.0
    %v362 = vsel %vm70, %v352, 0.0
    %v363 = vadd.f32 %v361, %v362
    %364 = vadd.xlane.f32.xlu0 %v363
    %v365 = vpop.xlane.xlu0 %364
    %v366 = vsel %vm70, %v355, 0.0
    %v367 = vsel %vm70, %v356, 0.0
    %v368 = vadd.f32 %v366, %v367
    %369 = vadd.xlane.f32.xlu0 %v368
    %v370 = vpop.xlane.xlu0 %369
    %v371 = vmul.f32 %v365, 0.00390625
    %v372 = vmul.f32 %v370, 0.00390625
    %v375 = vadd.s32 %v86, 4294967264
    %v376 = vperm.slane %v371, %v375
    %v377 = vperm.slane %v372, %v375
    %v378 = vsel %vm89, %v377, %v376
    %vm380 = vcmask 288000
    %381 = vst.msk [vmem:[#allocation2] sm:$0x3] %vm380, %v378
    %v382 = vld [vmem:[#allocation2] sm:$0x3]
    %v383 = vld [vmem:[%s1] sm:$0xff]
    %v384 = vld [vmem:[%s1 + $0x8] sm:$0xff]
    %v385 = vld [vmem:[%s1 + $0x10] sm:$0xff]
    %v386 = vld [vmem:[%s1 + $0x18] sm:$0xff]
    %v387 = vld [vmem:[%s1 + $0x20] sm:$0xf]
    %v388 = vld [vmem:[%s2] sm:$0x1]
    %v390 = vperm.slane %v388, 0
    %vm392 = vcmask 293888
    %v394 = vsel %vm392, %v382, 0
    %v397 = vsel %vm70, %v387, 0
    %399 = vmatpush.msra.mxu0 0.0
    %400 = vmatpush.msra.mxu0 0.0
    %401 = vmatpush.msra.mxu0 0.0
    %402 = vmatpush.msra.mxu0 0.0
    %403 = vmatpush.msra.mxu0 0.0
    %404 = vmatpush.msra.mxu0 0.0
    %405 = vmatpush.msra.mxu0 0.0
    %406 = vmatpush.msra.mxu0 0.0
    %407 = vmatpush.msra.mxu0 0.0
    %408 = vmatpush.msra.mxu0 0.0
    %409 = vmatpush.msra.mxu0 0.0
    %410 = vmatpush.msra.mxu0 %v397
    %411 = vmatpush.msra.mxu0 %v386
    %412 = vmatpush.msra.mxu0 %v385
    %413 = vmatpush.msra.mxu0 %v384
    %414 = vmatpush.msra.mxu0 %v383
    %415 = vmatmul.f32.gmra.mxu0 %v394
    %v416 = vpop.f32.mrf.mxu0
    %v417 = vadd.f32 %v390, %v416
    %418 = vdwg.mxu0
    %v419 = vmax.f32 %v417, 0.0
    %v420 = vld [vmem:[#allocation4] sm:$0xff]
    %v421 = vld [vmem:[#allocation4 + $0x8] sm:$0xff]
    %v422 = vld [vmem:[#allocation4 + $0x10] sm:$0xff]
    %v423 = vld [vmem:[#allocation4 + $0x18] sm:$0xff]
    %v424 = vld [vmem:[%s4] sm:$0x1]
    %v426 = vperm.slane %v424, 0
    %vm428 = vcmask 261120
    %v430 = vsel %vm428, %v419, 0
    %432 = vmatpush.msra.mxu0 0.0
    %433 = vmatpush.msra.mxu0 0.0
    %434 = vmatpush.msra.mxu0 0.0
    %435 = vmatpush.msra.mxu0 0.0
    %436 = vmatpush.msra.mxu0 0.0
    %437 = vmatpush.msra.mxu0 0.0
    %438 = vmatpush.msra.mxu0 0.0
    %439 = vmatpush.msra.mxu0 0.0
    %440 = vmatpush.msra.mxu0 0.0
    %441 = vmatpush.msra.mxu0 0.0
    %442 = vmatpush.msra.mxu0 0.0
    %443 = vmatpush.msra.mxu0 0.0
    %444 = vmatpush.msra.mxu0 %v423
    %445 = vmatpush.msra.mxu0 %v422
    %446 = vmatpush.msra.mxu0 %v421
    %447 = vmatpush.msra.mxu0 %v420
    %448 = vmatmul.f32.gmra.mxu0 %v430
    %v449 = vpop.f32.mrf.mxu0
    %v450 = vadd.f32 %v426, %v449
    %451 = vdwg.mxu0
    %vm452 = vcmask 287744
    %v453 = vsel %vm452, %v450, -inf
    %454 = vmax.xlane.f32.xlu0 %v453
    %v455 = vpop.xlane.xlu0 %454
    %v456 = vsub.f32 %v450, %v455
    %v457 = vmul.f32 %v456, 1.442695
    %v458 = vpow.pop %v457
    %459 = vst.msk [vmem:[#allocation3] sm:$0x3] %vm452, %v458
    %v460 = vld [vmem:[#allocation3] sm:$0x3]
    %462 = vrot.lane.b32.xlu0 %v460, 124
    %v463 = vpop.permute.xlu0 %462
    %v465 = vadd.f32 %v460, %v463
    %466 = vrot.lane.b32.xlu0 %v460, 120
    %v467 = vpop.permute.xlu0 %466
    %v469 = vadd.f32 %v465, %v467
    %470 = vrot.lane.b32.xlu0 %v460, 116
    %v471 = vpop.permute.xlu0 %470
    %v473 = vadd.f32 %v469, %v471
    %474 = vrot.lane.b32.xlu0 %v460, 112
    %v475 = vpop.permute.xlu0 %474
    %v477 = vadd.f32 %v473, %v475
    %478 = vrot.lane.b32.xlu0 %v460, 108
    %v479 = vpop.permute.xlu0 %478
    %v481 = vadd.f32 %v477, %v479
    %482 = vrot.lane.b32.xlu0 %v460, 104
    %v483 = vpop.permute.xlu0 %482
    %v485 = vadd.f32 %v481, %v483
    %486 = vrot.lane.b32.xlu0 %v460, 100
    %v487 = vpop.permute.xlu0 %486
    %v489 = vadd.f32 %v485, %v487
    %490 = vrot.lane.b32.xlu0 %v460, 96
    %v491 = vpop.permute.xlu0 %490
    %v493 = vadd.f32 %v489, %v491
    %v494 = vrcp.pop %v493
    %v495 = vmul.f32 %v493, %v494
    %v496 = vsub.f32 1.0, %v495
    %v497 = vmul.f32 %v494, %v496
    %v498 = vadd.f32 %v494, %v497
    %vm499 = vweird.f32 %v493
    %vm500 = vweird.f32 %v494
    %vm501 = vmor %vm499, %vm500
    %v502 = vsel %vm501, %v494, %v498
    %v503 = vand.u32 2147483647, %v493
    %vm504 = vcmp.eq.f32.partialorder %v503, 8.507059e+37
    %v505 = vand.u32 %v493, 2147483648
    %v506 = vor.u32 1.1754944e-38, %v505
    %v507 = vsel %vm504, %v506, %v502
    %v508 = vmul.f32 1.0, %v507
    %v509 = vmul.f32 %v460, %v508
    %v510 = vperm.slane %v509, 0
    %v511 = vlaneseq
    %v512 = vshrl.u32 %v511, 7
    %514 = vset.pattern.permute.xlu0 %v512
    %515 = vperm.xlu0 %514, %v510
    %v516 = vpop.permute.xlu0 %515
    %v517 = vperm.slane %v509, 1
    %v518 = vlaneseq
    %v519 = vshrl.u32 %v518, 7
    %521 = vset.pattern.permute.xlu0 %v519
    %522 = vperm.xlu0 %521, %v517
    %v523 = vpop.permute.xlu0 %522
    %v527 = vunpack.c.l.s4 839922192
    %v528 = vunpack.c.0.s8 %v527
    %v529 = vperm.slane %v516, %v528
    %v531 = vunpack.c.l.s4 839922192
    %v532 = vunpack.c.0.s8 %v531
    %v533 = vperm.slane %v523, %v532
    %v536 = vmul.f32 %v55, %v529
    %v537 = vmul.f32 %v56, %v533
    %v538 = vadd.f32 %v536, 0.0
    %v539 = vadd.f32 %v537, 0.0
    %541 = vrot.lane.b32.xlu0 %v508, 4
    %v542 = vpop.permute.xlu0 %541
    %v544 = vmul.f32 %v460, %v542
    %v545 = vperm.slane %v544, 0
    %v546 = vlaneseq
    %v547 = vshrl.u32 %v546, 7
    %v548 = vadd.s32 %v547, 4
    %549 = vset.pattern.permute.xlu0 %v548
    %550 = vperm.xlu0 %549, %v545
    %v551 = vpop.permute.xlu0 %550
    %v552 = vperm.slane %v544, 1
    %v553 = vlaneseq
    %v554 = vshrl.u32 %v553, 7
    %v555 = vadd.s32 %v554, 4
    %556 = vset.pattern.permute.xlu0 %v555
    %557 = vperm.xlu0 %556, %v552
    %v558 = vpop.permute.xlu0 %557
    %v562 = vunpack.c.l.s4 839922192
    %v563 = vunpack.c.0.s8 %v562
    %v564 = vperm.slane %v551, %v563
    %v566 = vunpack.c.l.s4 839922192
    %v567 = vunpack.c.0.s8 %v566
    %v568 = vperm.slane %v558, %v567
    %v571 = vmul.f32 %v94, %v564
    %v572 = vmul.f32 %v95, %v568
    %v573 = vadd.f32 %v538, %v571
    %v574 = vadd.f32 %v539, %v572
    %575 = vrot.lane.b32.xlu0 %v508, 8
    %v576 = vpop.permute.xlu0 %575
    %v578 = vmul.f32 %v460, %v576
    %v579 = vperm.slane %v578, 0
    %v580 = vlaneseq
    %v581 = vshrl.u32 %v580, 7
    %v582 = vadd.s32 %v581, 8
    %583 = vset.pattern.permute.xlu0 %v582
    %584 = vperm.xlu0 %583, %v579
    %v585 = vpop.permute.xlu0 %584
    %v586 = vperm.slane %v578, 1
    %v587 = vlaneseq
    %v588 = vshrl.u32 %v587, 7
    %v589 = vadd.s32 %v588, 8
    %590 = vset.pattern.permute.xlu0 %v589
    %591 = vperm.xlu0 %590, %v586
    %v592 = vpop.permute.xlu0 %591
    %v596 = vunpack.c.l.s4 839922192
    %v597 = vunpack.c.0.s8 %v596
    %v598 = vperm.slane %v585, %v597
    %v600 = vunpack.c.l.s4 839922192
    %v601 = vunpack.c.0.s8 %v600
    %v602 = vperm.slane %v592, %v601
    %v605 = vmul.f32 %v130, %v598
    %v606 = vmul.f32 %v131, %v602
    %v607 = vadd.f32 %v573, %v605
    %v608 = vadd.f32 %v574, %v606
    %609 = vrot.lane.b32.xlu0 %v508, 12
    %v610 = vpop.permute.xlu0 %609
    %v612 = vmul.f32 %v460, %v610
    %v613 = vperm.slane %v612, 0
    %v614 = vlaneseq
    %v615 = vshrl.u32 %v614, 7
    %v616 = vadd.s32 %v615, 12
    %617 = vset.pattern.permute.xlu0 %v616
    %618 = vperm.xlu0 %617, %v613
    %v619 = vpop.permute.xlu0 %618
    %v620 = vperm.slane %v612, 1
    %v621 = vlaneseq
    %v622 = vshrl.u32 %v621, 7
    %v623 = vadd.s32 %v622, 12
    %624 = vset.pattern.permute.xlu0 %v623
    %625 = vperm.xlu0 %624, %v620
    %v626 = vpop.permute.xlu0 %625
    %v630 = vunpack.c.l.s4 839922192
    %v631 = vunpack.c.0.s8 %v630
    %v632 = vperm.slane %v619, %v631
    %v634 = vunpack.c.l.s4 839922192
    %v635 = vunpack.c.0.s8 %v634
    %v636 = vperm.slane %v626, %v635
    %v639 = vmul.f32 %v166, %v632
    %v640 = vmul.f32 %v167, %v636
    %v641 = vadd.f32 %v607, %v639
    %v642 = vadd.f32 %v608, %v640
    %643 = vrot.lane.b32.xlu0 %v508, 16
    %v644 = vpop.permute.xlu0 %643
    %v646 = vmul.f32 %v460, %v644
    %v647 = vperm.slane %v646, 0
    %v648 = vlaneseq
    %v649 = vshrl.u32 %v648, 7
    %v650 = vadd.s32 %v649, 16
    %651 = vset.pattern.permute.xlu0 %v650
    %652 = vperm.xlu0 %651, %v647
    %v653 = vpop.permute.xlu0 %652
    %v654 = vperm.slane %v646, 1
    %v655 = vlaneseq
    %v656 = vshrl.u32 %v655, 7
    %v657 = vadd.s32 %v656, 16
    %658 = vset.pattern.permute.xlu0 %v657
    %659 = vperm.xlu0 %658, %v654
    %v660 = vpop.permute.xlu0 %659
    %v664 = vunpack.c.l.s4 839922192
    %v665 = vunpack.c.0.s8 %v664
    %v666 = vperm.slane %v653, %v665
    %v668 = vunpack.c.l.s4 839922192
    %v669 = vunpack.c.0.s8 %v668
    %v670 = vperm.slane %v660, %v669
    %v673 = vmul.f32 %v202, %v666
    %v674 = vmul.f32 %v203, %v670
    %v675 = vadd.f32 %v641, %v673
    %v676 = vadd.f32 %v642, %v674
    %677 = vrot.lane.b32.xlu0 %v508, 20
    %v678 = vpop.permute.xlu0 %677
    %v680 = vmul.f32 %v460, %v678
    %v681 = vperm.slane %v680, 0
    %v682 = vlaneseq
    %v683 = vshrl.u32 %v682, 7
    %v684 = vadd.s32 %v683, 20
    %685 = vset.pattern.permute.xlu0 %v684
    %686 = vperm.xlu0 %685, %v681
    %v687 = vpop.permute.xlu0 %686
    %v688 = vperm.slane %v680, 1
    %v689 = vlaneseq
    %v690 = vshrl.u32 %v689, 7
    %v691 = vadd.s32 %v690, 20
    %692 = vset.pattern.permute.xlu0 %v691
    %693 = vperm.xlu0 %692, %v688
    %v694 = vpop.permute.xlu0 %693
    %v698 = vunpack.c.l.s4 839922192
    %v699 = vunpack.c.0.s8 %v698
    %v700 = vperm.slane %v687, %v699
    %v702 = vunpack.c.l.s4 839922192
    %v703 = vunpack.c.0.s8 %v702
    %v704 = vperm.slane %v694, %v703
    %v707 = vmul.f32 %v238, %v700
    %v708 = vmul.f32 %v239, %v704
    %v709 = vadd.f32 %v675, %v707
    %v710 = vadd.f32 %v676, %v708
    %711 = vrot.lane.b32.xlu0 %v508, 24
    %v712 = vpop.permute.xlu0 %711
    %v714 = vmul.f32 %v460, %v712
    %v715 = vperm.slane %v714, 0
    %v716 = vlaneseq
    %v717 = vshrl.u32 %v716, 7
    %v718 = vadd.s32 %v717, 24
    %719 = vset.pattern.permute.xlu0 %v718
    %720 = vperm.xlu0 %719, %v715
    %v721 = vpop.permute.xlu0 %720
    %v722 = vperm.slane %v714, 1
    %v723 = vlaneseq
    %v724 = vshrl.u32 %v723, 7
    %v725 = vadd.s32 %v724, 24
    %726 = vset.pattern.permute.xlu0 %v725
    %727 = vperm.xlu0 %726, %v722
    %v728 = vpop.permute.xlu0 %727
    %v732 = vunpack.c.l.s4 839922192
    %v733 = vunpack.c.0.s8 %v732
    %v734 = vperm.slane %v721, %v733
    %v736 = vunpack.c.l.s4 839922192
    %v737 = vunpack.c.0.s8 %v736
    %v738 = vperm.slane %v728, %v737
    %v741 = vmul.f32 %v274, %v734
    %v742 = vmul.f32 %v275, %v738
    %v743 = vadd.f32 %v709, %v741
    %v744 = vadd.f32 %v710, %v742
    %745 = vrot.lane.b32.xlu0 %v508, 28
    %v746 = vpop.permute.xlu0 %745
    %v748 = vmul.f32 %v460, %v746
    %v749 = vperm.slane %v748, 0
    %v750 = vlaneseq
    %v751 = vshrl.u32 %v750, 7
    %v752 = vadd.s32 %v751, 28
    %753 = vset.pattern.permute.xlu0 %v752
    %754 = vperm.xlu0 %753, %v749
    %v755 = vpop.permute.xlu0 %754
    %v756 = vperm.slane %v748, 1
    %v757 = vlaneseq
    %v758 = vshrl.u32 %v757, 7
    %v759 = vadd.s32 %v758, 28
    %760 = vset.pattern.permute.xlu0 %v759
    %761 = vperm.xlu0 %760, %v756
    %v762 = vpop.permute.xlu0 %761
    %v766 = vunpack.c.l.s4 839922192
    %v767 = vunpack.c.0.s8 %v766
    %v768 = vperm.slane %v755, %v767
    %v770 = vunpack.c.l.s4 839922192
    %v771 = vunpack.c.0.s8 %v770
    %v772 = vperm.slane %v762, %v771
    %v775 = vmul.f32 %v310, %v768
    %v776 = vmul.f32 %v311, %v772
    %v777 = vadd.f32 %v743, %v775
    %v778 = vadd.f32 %v744, %v776
    %779 = vrot.lane.b32.xlu0 %v508, 32
    %v780 = vpop.permute.xlu0 %779
    %v782 = vmul.f32 %v460, %v780
    %v783 = vperm.slane %v782, 0
    %v784 = vlaneseq
    %v785 = vshrl.u32 %v784, 7
    %v786 = vadd.s32 %v785, 32
    %787 = vset.pattern.permute.xlu0 %v786
    %788 = vperm.xlu0 %787, %v783
    %v789 = vpop.permute.xlu0 %788
    %v790 = vperm.slane %v782, 1
    %v791 = vlaneseq
    %v792 = vshrl.u32 %v791, 7
    %v793 = vadd.s32 %v792, 32
    %794 = vset.pattern.permute.xlu0 %v793
    %795 = vperm.xlu0 %794, %v790
    %v796 = vpop.permute.xlu0 %795
    %v800 = vunpack.c.l.s4 839922192
    %v801 = vunpack.c.0.s8 %v800
    %v802 = vperm.slane %v789, %v801
    %v804 = vunpack.c.l.s4 839922192
    %v805 = vunpack.c.0.s8 %v804
    %v806 = vperm.slane %v796, %v805
    %v809 = vmul.f32 %v346, %v802
    %v810 = vmul.f32 %v347, %v806
    %v811 = vadd.f32 %v777, %v809
    %v812 = vadd.f32 %v778, %v810
    %813 = vst [vmem:[#allocation7] sm:$0xff] %v811
    %814 = vst [vmem:[#allocation7 + $0x8] sm:$0xff] %v812
    // Predicated region
    $region26: #{tpu_custom_call.1} parent=1 // pred_check
      _
    $region27: #{tpu_custom_call.1} parent=1 // pred_check_branch
      %816 = sbr.rel (0) target = $region29
    $region28: #{tpu_custom_call.1} parent=1 // pred_region
      %818 = vsyncadd [#allocation6], 0
      %s819 = sshll.u32 [#allocation7], 4
      %s820 = int_to_ptr.vmem [resolvable:$true] %s819
      %s821 = sshll.u32 %s5, 4
      %s822 = int_to_ptr.hbm [resolvable:$true] %s821
      %827 = dma.vmem_to_hbm [thread:$0]  %s820, 256, %s822, [#allocation6], 128, 128, 8
    $region29: #{tpu_custom_call.1} parent=1 // pred_fallthru
      _
    // Predicated region
    $region30: #{tpu_custom_call.1} parent=1 // pred_check
      _
    $region31: #{tpu_custom_call.1} parent=1 // pred_check_branch
      %829 = sbr.rel (0) target = $region33
    $region32: #{tpu_custom_call.1} parent=1 // pred_region
      %831 = dma.done [#allocation6], 256
    $region33: #{tpu_custom_call.1} parent=1 // pred_fallthru
      _
    %832 = vsyncpa [#allocation5], 1
    %833 = vsyncpa [#allocation6], 1

</llo_original>
